<compile_context>
chip_gen: v5e
topology: v5e:2x2
jax: 0.10.0
libtpu: 0.0.40
codegen_flags: <defaults>
</compile_context>

<pallas_src>
import functools
import math

import numpy as np
import jax
import jax.numpy as jnp
from jax import lax
from jax.experimental import pallas as pl
from jax.experimental.pallas import tpu as pltpu


# ------------------------------ generation-aware budgets ------------------------------

def _vmem_limit_bytes():
    default = 32 * 1024 * 1024
    try:
        info = pltpu.get_tpu_info()
        cap = getattr(info, "vmem_capacity_bytes", None)
        if not cap:
            return default
        # leave DMA/double-buffer headroom; clip to a sane range
        return int(min(96 * 2 ** 20, max(default, int(cap) - 16 * 2 ** 20)))
    except Exception:
        return default


_VMEM_LIMIT = _vmem_limit_bytes()
_BIG_VMEM = _VMEM_LIMIT >= 64 * 2 ** 20          # v5e/v6e (128 MiB phys) vs v7x (64 MiB)
_TM_CAP = 1024 if _BIG_VMEM else 512
_TN_CAP = 1024 if _BIG_VMEM else 768
_TK_CAP = 3072 if _BIG_VMEM else 1536


def _pick_tile(dim, cap, multiple=128):
    """Largest divisor of `dim` that is <= cap and a multiple of `multiple`;
    if dim already fits under cap, use it whole."""
    if dim <= cap:
        return dim
    c = cap - (cap % multiple)
    while c >= multiple:
        if dim % c == 0:
            return c
        c -= multiple
    c = min(cap, dim)
    while c >= 8:                                 # fall back: any sublane-aligned divisor
        if dim % c == 0 and c % 8 == 0:
            return c
        c -= 8
    # TODO(synk): pad instead of whole-extent fallback for pathological dims.
    return dim


def _pad_rows(x, multiple=8):
    m = x.shape[0]
    if m % multiple == 0:
        return x, m
    mp = (m + multiple - 1) // multiple * multiple
    return jnp.pad(x, ((0, mp - m), (0, 0))), mp


# ----------------------------- tiled linear (matmul) -----------------------------

def _linear_kernel(x_ref, w_ref, b_ref, o_ref, acc_ref, *, activation):
    @pl.when(pl.program_id(2) == 0)
    def _():
        acc_ref[...] = jnp.zeros_like(acc_ref)

    acc_ref[...] += jnp.dot(x_ref[...], w_ref[...], preferred_element_type=jnp.float32)

    @pl.when(pl.program_id(2) == pl.num_programs(2) - 1)
    def _():
        y = acc_ref[...] + b_ref[...]
        if activation == "gelu":
            # TODO(synk): HF/PreSumm BERT uses erf-GELU; tanh approximation kept here.
            y = 0.5 * y * (1.0 + jnp.tanh(0.7978845608028654 * (y + 0.044715 * y * y * y)))
        o_ref[...] = y.astype(o_ref.dtype)


def pallas_linear(x, w, b, activation=None, out_dtype=jnp.bfloat16,
                  tm_cap=_TM_CAP, tn_cap=_TN_CAP, tk_cap=_TK_CAP):
    """x: (..., K) bf16; w: (K, N) bf16; b: (N,) f32 -> (..., N) out_dtype."""
    lead = x.shape[:-1]
    K = x.shape[-1]
    N = w.shape[1]
    M = int(np.prod(lead)) if lead else 1
    x2, Mp = _pad_rows(x.reshape(M, K))

    tm = _pick_tile(Mp, tm_cap, 128)
    tn = _pick_tile(N, tn_cap, 128)
    tk = _pick_tile(K, tk_cap, 128)
    grid = (Mp // tm, N // tn, K // tk)

    out = pl.pallas_call(
        functools.partial(_linear_kernel, activation=activation),
        out_shape=jax.ShapeDtypeStruct((Mp, N), out_dtype),
        grid_spec=pltpu.PrefetchScalarGridSpec(
            num_scalar_prefetch=0,
            grid=grid,
            in_specs=[
                pl.BlockSpec((tm, tk), lambda i, j, k: (i, k)),
                pl.BlockSpec((tk, tn), lambda i, j, k: (k, j)),
                pl.BlockSpec((1, tn), lambda i, j, k: (0, j)),
            ],
            out_specs=pl.BlockSpec((tm, tn), lambda i, j, k: (i, j)),
            scratch_shapes=[pltpu.VMEM((tm, tn), jnp.float32)],
        ),
        compiler_params=pltpu.CompilerParams(
            dimension_semantics=("parallel", "parallel", "arbitrary"),
            vmem_limit_bytes=_VMEM_LIMIT,
        ),
    )(x2, w, b.reshape(1, N))
    if Mp != M:
        out = out[:M]
    return out.reshape(*lead, N)


# ------------------------- row-tiled layernorm (+ fused residual) -------------------------

def _layernorm_kernel(*refs, eps, n_in, with_sum, hidden):
    # refs = (x, [residual], gamma, beta, ln_out, [sum_out])
    x = refs[0][...].astype(jnp.float32)
    if n_in == 2:
        x = x + refs[1][...].astype(jnp.float32)
    g = refs[n_in][...]
    b = refs[n_in + 1][...]
    inv_h = 1.0 / hidden
    # one-pass stats: the two lane reductions are independent and overlap on the XLU
    mu = jnp.sum(x, axis=-1, keepdims=True) * inv_h
    var = jnp.sum(x * x, axis=-1, keepdims=True) * inv_h - mu * mu
    y = (x - mu) * lax.rsqrt(var + eps) * g + b
    refs[n_in + 2][...] = y.astype(refs[n_in + 2].dtype)
    if with_sum:
        refs[n_in + 3][...] = x.astype(refs[n_in + 3].dtype)


def pallas_layernorm(x, g, b, eps, residual=None, return_sum=False,
                     out_dtype=jnp.bfloat16, sum_dtype=jnp.float32):
    """LayerNorm(x [+ residual]); optionally also returns (x + residual) (f32 by default)."""
    lead = x.shape[:-1]
    H = x.shape[-1]
    M = int(np.prod(lead)) if lead else 1

    x2, Mp = _pad_rows(x.reshape(M, H))
    ops = [x2]
    n_in = 1
    if residual is not None:
        r2, _ = _pad_rows(residual.reshape(M, H))
        ops.append(r2)
        n_in = 2
    ops += [g.reshape(1, H), b.reshape(1, H)]

    tm = _pick_tile(Mp, 512, 128)
    row_spec = pl.BlockSpec((tm, H), lambda i: (i, 0))
    vec_spec = pl.BlockSpec((1, H), lambda i: (0, 0))

    out_shapes = [jax.ShapeDtypeStruct((Mp, H), out_dtype)]
    out_specs = [row_spec]
    if return_sum:
        out_shapes.append(jax.ShapeDtypeStruct((Mp, H), sum_dtype))
        out_specs.append(row_spec)

    outs = pl.pallas_call(
        functools.partial(_layernorm_kernel, eps=eps, n_in=n_in,
                          with_sum=return_sum, hidden=H),
        out_shape=tuple(out_shapes),
        grid_spec=pltpu.PrefetchScalarGridSpec(
            num_scalar_prefetch=0,
            grid=(Mp // tm,),
            in_specs=[row_spec] * n_in + [vec_spec, vec_spec],
            out_specs=tuple(out_specs),
        ),
        compiler_params=pltpu.CompilerParams(
            dimension_semantics=("parallel",),
            vmem_limit_bytes=_VMEM_LIMIT,
        ),
    )(*ops)

    ln = outs[0][:M].reshape(*lead, H)
    if return_sum:
        return ln, outs[1][:M].reshape(*lead, H)
    return ln


# --------------------- flash-style multi-head attention (per-head grid) ---------------------

def _mha_kernel(kvlen_ref, q_ref, k_ref, v_ref, bias_ref, o_ref,
                m_sc, l_sc, acc_sc, *, tkv):
    # q_ref: (tq, Dh) (already scaled by 1/sqrt(Dh)); k_ref/v_ref: (tkv, Dh);
    # bias_ref: (1, tkv); o_ref: (tq, Dh)
    kv = pl.program_id(3)

    @pl.when(kv == 0)
    def _():
        m_sc[...] = jnp.full_like(m_sc, -1e30)
        l_sc[...] = jnp.zeros_like(l_sc)
        acc_sc[...] = jnp.zeros_like(acc_sc)

    # Skip kv tiles that lie entirely beyond the last valid key of this batch row.
    # Tile 0 always runs so fully-masked rows still produce finite values.
    @pl.when((kv == 0) | (kv * tkv < kvlen_ref[pl.program_id(0)]))
    def _():
        q = q_ref[...]
        k = k_ref[...]
        v = v_ref[...]
        s = lax.dot_general(q, k, (((1,), (1,)), ((), ())),
                            preferred_element_type=jnp.float32) + bias_ref[...]
        m_prev = m_sc[...]
        m_new = jnp.maximum(m_prev, jnp.max(s, axis=-1, keepdims=True))
        alpha = jnp.exp(m_prev - m_new)
        p = jnp.exp(s - m_new)
        l_sc[...] = alpha * l_sc[...] + jnp.sum(p, axis=-1, keepdims=True)
        acc_sc[...] = alpha * acc_sc[...] + jnp.dot(
            p.astype(v.dtype), v, preferred_element_type=jnp.float32)
        m_sc[...] = m_new

    @pl.when(kv == pl.num_programs(3) - 1)
    def _():
        o_ref[...] = (acc_sc[...] * pl.reciprocal(l_sc[...], approx=True)).astype(o_ref.dtype)


def pallas_mha(qkv, key_mask, num_heads, tq_cap=256, tkv_cap=512):
    """qkv: (B, S, 3H) bf16 fused Q|K|V projections; key_mask: (B, S) in {0,1}."""
    B, S, threeH = qkv.shape
    H = threeH // 3
    assert H % num_heads == 0
    Dh = H // num_heads
    scale = 1.0 / math.sqrt(Dh)

    # Per-head layout; the softmax scale is folded into Q here so it fuses with the
    # transpose copy (zero in-kernel cost).  Layout plumbing, not compute hoisting.
    qkv4 = qkv.reshape(B, S, 3, num_heads, Dh)
    q = (qkv4[:, :, 0] * scale).astype(jnp.bfloat16).transpose(0, 2, 1, 3)  # (B, nh, S, Dh)
    k = qkv4[:, :, 1].transpose(0, 2, 1, 3)
    v = qkv4[:, :, 2].transpose(0, 2, 1, 3)

    mask_f = key_mask.astype(jnp.float32)
    bias = ((1.0 - mask_f) * -1e9).reshape(B, 1, S)
    # index of the last valid key + 1 per batch row (for skipping padded kv tiles)
    kv_len = jnp.max(
        jnp.where(mask_f > 0.0, jnp.arange(S, dtype=jnp.int32)[None, :] + 1, 0),
        axis=1).astype(jnp.int32)

    tq = _pick_tile(S, tq_cap, 128)
    tkv = _pick_tile(S, tkv_cap, 128)
    grid = (B, num_heads, S // tq, S // tkv)

    out = pl.pallas_call(
        functools.partial(_mha_kernel, tkv=tkv),
        out_shape=jax.ShapeDtypeStruct((B, num_heads, S, Dh), jnp.bfloat16),
        grid_spec=pltpu.PrefetchScalarGridSpec(
            num_scalar_prefetch=1,
            grid=grid,
            in_specs=[
                pl.BlockSpec((None, None, tq, Dh),
                             lambda b, h, qi, kv, kvl: (b, h, qi, 0)),
                pl.BlockSpec((None, None, tkv, Dh),
                             lambda b, h, qi, kv, kvl: (b, h, kv, 0)),
                pl.BlockSpec((None, None, tkv, Dh),
                             lambda b, h, qi, kv, kvl: (b, h, kv, 0)),
                pl.BlockSpec((None, 1, tkv),
                             lambda b, h, qi, kv, kvl: (b, 0, kv)),
            ],
            out_specs=pl.BlockSpec((None, None, tq, Dh),
                                   lambda b, h, qi, kv, kvl: (b, h, qi, 0)),
            scratch_shapes=[
                pltpu.VMEM((tq, 1), jnp.float32),    # running max
                pltpu.VMEM((tq, 1), jnp.float32),    # running denom
                pltpu.VMEM((tq, Dh), jnp.float32),   # output accumulator
            ],
        ),
        compiler_params=pltpu.CompilerParams(
            dimension_semantics=("parallel", "parallel", "parallel", "arbitrary"),
            vmem_limit_bytes=_VMEM_LIMIT,
        ),
    )(kv_len, q, k, v, bias)
    return out.transpose(0, 2, 1, 3).reshape(B, S, H)


# ------------------- sentence prep: mask-multiply + positional-encoding add -------------------

def _sent_prep_kernel(g_ref, m_ref, pe_ref, sv_ref, x_ref):
    sv = g_ref[...].astype(jnp.float32) * m_ref[...]
    sv_ref[...] = sv.astype(sv_ref.dtype)
    x_ref[...] = (sv + pe_ref[...]).astype(x_ref.dtype)


def pallas_sentence_prep(gathered, mask_cls, pe):
    """sents_vec = gathered * mask; x = sents_vec + pe (one fused pass)."""
    B, N, H = gathered.shape
    m = mask_cls.astype(jnp.float32).reshape(B, N, 1)
    sv, x = pl.pallas_call(
        _sent_prep_kernel,
        out_shape=(jax.ShapeDtypeStruct((B, N, H), jnp.float32),
                   jax.ShapeDtypeStruct((B, N, H), jnp.bfloat16)),
        grid_spec=pltpu.PrefetchScalarGridSpec(
            num_scalar_prefetch=0,
            grid=(B,),
            in_specs=[
                pl.BlockSpec((None, N, H), lambda b: (b, 0, 0)),
                pl.BlockSpec((None, N, 1), lambda b: (b, 0, 0)),
                pl.BlockSpec((N, H), lambda b: (0, 0)),
            ],
            out_specs=(pl.BlockSpec((None, N, H), lambda b: (b, 0, 0)),
                       pl.BlockSpec((None, N, H), lambda b: (b, 0, 0))),
        ),
        compiler_params=pltpu.CompilerParams(
            dimension_semantics=("parallel",),
            vmem_limit_bytes=_VMEM_LIMIT,
        ),
    )(gathered, m, pe)
    return sv, x


# ----------------------------------- parameter init -----------------------------------

def init_params(key, cfg):
    H = cfg["hidden"]
    keys = iter(jax.random.split(key, 512))
    nk = lambda: next(keys)
    dense = lambda din, dout: (jax.random.normal(nk(), (din, dout), jnp.float32) * 0.02
                               ).astype(jnp.bfloat16)
    emb = lambda n, d: jax.random.normal(nk(), (n, d), jnp.float32) * 0.02
    zeros = lambda d: jnp.zeros((d,), jnp.float32)
    ones = lambda d: jnp.ones((d,), jnp.float32)

    bert_layers = []
    for _ in range(cfg["bert_layers"]):
        bert_layers.append(dict(
            wqkv=dense(H, 3 * H), bqkv=zeros(3 * H),
            wo=dense(H, H), bo=zeros(H),
            ln1_g=ones(H), ln1_b=zeros(H),
            w1=dense(H, cfg["bert_ff"]), b1=zeros(cfg["bert_ff"]),
            w2=dense(cfg["bert_ff"], H), b2=zeros(H),
            ln2_g=ones(H), ln2_b=zeros(H)))

    ext_layers = []
    for _ in range(cfg["ext_layers"]):
        ext_layers.append(dict(
            ln_g=ones(H), ln_b=zeros(H),
            wqkv=dense(H, 3 * H), bqkv=zeros(3 * H),
            wo=dense(H, H), bo=zeros(H),
            ff_ln_g=ones(H), ff_ln_b=zeros(H),
            w1=dense(H, cfg["ext_ff"]), b1=zeros(cfg["ext_ff"]),
            w2=dense(cfg["ext_ff"], H), b2=zeros(H)))

    # Sinusoidal positional encoding used by ExtTransformerEncoder (PreSumm).
    pos = np.arange(cfg["max_sents"])[:, None].astype(np.float64)
    div = np.exp(np.arange(0, H, 2).astype(np.float64) * -(math.log(10000.0) / H))
    pe = np.zeros((cfg["max_sents"], H), np.float32)
    pe[:, 0::2] = np.sin(pos * div)
    pe[:, 1::2] = np.cos(pos * div)

    return dict(
        word_emb=emb(cfg["vocab"], H),
        pos_emb=emb(cfg["max_pos"], H),
        type_emb=emb(cfg["type_vocab"], H),
        emb_ln_g=ones(H), emb_ln_b=zeros(H),
        bert_layers=bert_layers,
        ext_pe=jnp.asarray(pe),
        ext_layers=ext_layers,
        ext_final_ln_g=ones(H), ext_final_ln_b=zeros(H),
    )


# ------------------------------------- forward pass -------------------------------------

def bert_forward(params, src, segs, mask_src, num_heads):
    B, S = src.shape
    # Embedding lookups are glue gathers; LayerNorm + matmuls + attention are Pallas.
    x = (params["word_emb"][src]
         + params["pos_emb"][jnp.arange(S)][None]
         + params["type_emb"][segs])
    x = pallas_layernorm(x, params["emb_ln_g"], params["emb_ln_b"], eps=1e-12)
    for lyr in params["bert_layers"]:
        qkv = pallas_linear(x, lyr["wqkv"], lyr["bqkv"])                 # fused Q|K|V
        ctx = pallas_mha(qkv, mask_src, num_heads)
        attn = pallas_linear(ctx, lyr["wo"], lyr["bo"])
        x = pallas_layernorm(attn, lyr["ln1_g"], lyr["ln1_b"], eps=1e-12, residual=x)
        h = pallas_linear(x, lyr["w1"], lyr["b1"], activation="gelu")
        h = pallas_linear(h, lyr["w2"], lyr["b2"])
        x = pallas_layernorm(h, lyr["ln2_g"], lyr["ln2_b"], eps=1e-12, residual=x)
    return x  # top_vec, (B, S, H) bf16


def ext_transformer_forward(params, x_stream, mask_cls, num_heads):
    # Mirrors PreSumm ExtTransformerEncoder (dropout omitted: inference semantics).
    layers = params["ext_layers"]
    if not layers:
        return pallas_layernorm(x_stream, params["ext_final_ln_g"],
                                params["ext_final_ln_b"], eps=1e-6, out_dtype=jnp.float32)

    inp = x_stream       # un-normalized residual stream (kept in f32 after layer 0)
    xn = x_stream        # layer 0 uses the un-normalized input (PreSumm iter==0)
    result = None
    for i, lyr in enumerate(layers):
        qkv = pallas_linear(xn, lyr["wqkv"], lyr["bqkv"])
        ctx = pallas_mha(qkv, mask_cls, num_heads)
        ctx = pallas_linear(ctx, lyr["wo"], lyr["bo"])
        # out = ctx + inp; ff_in = LN_ff(out)   (residual add fused into LN, sum kept f32)
        ff_in, out = pallas_layernorm(ctx, lyr["ff_ln_g"], lyr["ff_ln_b"], eps=1e-6,
                                      residual=inp, return_sum=True)
        h = pallas_linear(ff_in, lyr["w1"], lyr["b1"], activation="gelu")
        h = pallas_linear(h, lyr["w2"], lyr["b2"])
        if i + 1 < len(layers):
            nxt = layers[i + 1]
            # next stream = h + out; next layer's input LN fused with the residual add
            xn, inp = pallas_layernorm(h, nxt["ln_g"], nxt["ln_b"], eps=1e-6,
                                       residual=out, return_sum=True)
        else:
            # final LayerNorm fused with the last residual add
            result = pallas_layernorm(h, params["ext_final_ln_g"], params["ext_final_ln_b"],
                                      eps=1e-6, residual=out, out_dtype=jnp.float32)
    # TODO(synk): the stock ExtTransformerEncoder adds wo+sigmoid sentence scores;
    # this "embedding" variant returns the layer-normalized sentence embeddings.
    return result


def bert_sum_embedding_forward(params, src, segs, clss, mask_src, mask_cls,
                               bert_heads, ext_heads, full_through=True):
    if full_through:
        top_vec = bert_forward(params, src, segs, mask_src, bert_heads)
        B = top_vec.shape[0]
        gathered = top_vec[jnp.arange(B)[:, None], clss]        # CLS-position gather (glue)
    else:
        gathered = src
    N = gathered.shape[1]
    # mask-multiply applied once (reference applies a binary mask twice; idempotent),
    # fused with the positional-encoding add of the ext encoder.
    sents_vec, x = pallas_sentence_prep(gathered, mask_cls, params["ext_pe"][:N])
    embeddings = ext_transformer_forward(params, x, mask_cls, ext_heads)
    return embeddings, sents_vec


# ---------------------------------------- main ----------------------------------------

if __name__ == "__main__":
    B, S, N = 2, 16, 4
    H, BERT_HEADS, BERT_LAYERS, BERT_FF = 128, 4, 2, 256
    VOCAB, MAXPOS, TYPES = 64, 32, 2
    EXT_HEADS, EXT_LAYERS, EXT_FF = 4, 2, 256

    cfg = dict(hidden=H, bert_layers=BERT_LAYERS, bert_ff=BERT_FF,
               ext_layers=EXT_LAYERS, ext_ff=EXT_FF,
               vocab=VOCAB, max_pos=MAXPOS, type_vocab=TYPES, max_sents=32)

    key = jax.random.PRNGKey(0)
    kp, kd = jax.random.split(key)
    params = init_params(kp, cfg)

    k1, k2 = jax.random.split(kd)
    src = jax.random.randint(k1, (B, S), 0, VOCAB, dtype=jnp.int32)
    segs = jax.random.randint(k2, (B, S), 0, TYPES, dtype=jnp.int32)
    clss = jnp.tile(jnp.array([0, 4, 8, 12], jnp.int32), (B, 1))   # CLS positions
    mask_src = jnp.ones((B, S), jnp.float32).at[:, S - 2:].set(0.0)
    mask_cls = jnp.ones((B, N), jnp.float32).at[1, N - 1].set(0.0)

    embeddings, sents_vec = bert_sum_embedding_forward(
        params, src, segs, clss, mask_src, mask_cls,
        bert_heads=BERT_HEADS, ext_heads=EXT_HEADS, full_through=True)

    jax.block_until_ready((embeddings, sents_vec))
    assert embeddings.shape == (B, N, H) and sents_vec.shape == (B, N, H)
    assert bool(jnp.all(jnp.isfinite(embeddings))) and bool(jnp.all(jnp.isfinite(sents_vec)))
    print("KERNEL_OK")
</pallas_src>

<mosaic_0001>
module attributes {stable_mosaic.version = 11 : i64} {
  func.func @_layernorm_kernel(%arg0: i32, %arg1: memref<32x128xf32, #tpu.memory_space<vmem>>, %arg2: memref<1x128xf32, #tpu.memory_space<vmem>>, %arg3: memref<1x128xf32, #tpu.memory_space<vmem>>, %arg4: memref<32x128xbf16, #tpu.memory_space<vmem>>) attributes {dimension_semantics = [#tpu.dimension_semantics<parallel>], iteration_bounds = array<i64: 1>, scalar_prefetch = 0 : i64, scratch_operands = 0 : i64, tpu.core_type = #tpu.core_type<tc>, window_params = [{transform_indices = @transform_0, window_bounds = array<i64: 32, 128>}, {pipeline_mode = #tpu.pipeline_mode<synchronous>, transform_indices = @transform_1, window_bounds = array<i64: 1, 128>}, {pipeline_mode = #tpu.pipeline_mode<synchronous>, transform_indices = @transform_2, window_bounds = array<i64: 1, 128>}, {transform_indices = @transform_3, window_bounds = array<i64: 32, 128>}]} {
    %c0 = arith.constant 0 : index
    %c0_0 = arith.constant 0 : index
    %0 = vector.load %arg1[%c0, %c0_0] : memref<32x128xf32, #tpu.memory_space<vmem>>, vector<32x128xf32>
    %c0_1 = arith.constant 0 : index
    %c0_2 = arith.constant 0 : index
    %1 = vector.load %arg2[%c0_1, %c0_2] : memref<1x128xf32, #tpu.memory_space<vmem>>, vector<1x128xf32>
    %c0_3 = arith.constant 0 : index
    %c0_4 = arith.constant 0 : index
    %2 = vector.load %arg3[%c0_3, %c0_4] : memref<1x128xf32, #tpu.memory_space<vmem>>, vector<1x128xf32>
    %cst = arith.constant dense<0.000000e+00> : vector<32xf32>
    %3 = vector.multi_reduction <add>, %0, %cst [1] : vector<32x128xf32> to vector<32xf32>
    %4 = vector.shape_cast %3 : vector<32xf32> to vector<32x1xf32>
    %cst_5 = arith.constant 7.812500e-03 : f32
    %5 = vector.broadcast %cst_5 : f32 to vector<32x1xf32>
    %6 = arith.mulf %4, %5 : vector<32x1xf32>
    %7 = arith.mulf %0, %0 : vector<32x128xf32>
    %cst_6 = arith.constant dense<0.000000e+00> : vector<32xf32>
    %8 = vector.multi_reduction <add>, %7, %cst_6 [1] : vector<32x128xf32> to vector<32xf32>
    %9 = vector.shape_cast %8 : vector<32xf32> to vector<32x1xf32>
    %cst_7 = arith.constant 7.812500e-03 : f32
    %10 = vector.broadcast %cst_7 : f32 to vector<32x1xf32>
    %11 = arith.mulf %9, %10 : vector<32x1xf32>
    %12 = arith.mulf %6, %6 : vector<32x1xf32>
    %13 = arith.subf %11, %12 : vector<32x1xf32>
    %14 = vector.broadcast %6 : vector<32x1xf32> to vector<32x128xf32>
    %15 = arith.subf %0, %14 : vector<32x128xf32>
    %cst_8 = arith.constant 9.99999996E-13 : f32
    %16 = vector.broadcast %cst_8 : f32 to vector<32x1xf32>
    %17 = arith.addf %13, %16 : vector<32x1xf32>
    %18 = math.rsqrt %17 : vector<32x1xf32>
    %19 = vector.broadcast %18 : vector<32x1xf32> to vector<32x128xf32>
    %20 = arith.mulf %15, %19 : vector<32x128xf32>
    %21 = vector.broadcast %1 : vector<1x128xf32> to vector<32x128xf32>
    %22 = arith.mulf %20, %21 : vector<32x128xf32>
    %23 = vector.broadcast %2 : vector<1x128xf32> to vector<32x128xf32>
    %24 = arith.addf %22, %23 : vector<32x128xf32>
    %25 = arith.truncf %24 : vector<32x128xf32> to vector<32x128xbf16>
    %c0_9 = arith.constant 0 : index
    %c0_10 = arith.constant 0 : index
    %26 = vector.load %arg4[%c0_9, %c0_10] : memref<32x128xbf16, #tpu.memory_space<vmem>>, vector<32x128xbf16>
    tpu.vector_store %arg4[%c0_9, %c0_10], %25 {strides = array<i32>} : memref<32x128xbf16, #tpu.memory_space<vmem>>, vector<32x128xbf16>,
    return
  }
  func.func @transform_0(%arg0: i32) -> (i32, i32) {
    %c0_i32 = arith.constant 0 : i32
    %c0_i32_0 = arith.constant 0 : i32
    return %arg0, %c0_i32 : i32, i32
  }
  func.func @transform_1(%arg0: i32) -> (i32, i32) {
    %c0_i32 = arith.constant 0 : i32
    %c0_i32_0 = arith.constant 0 : i32
    %c0_i32_1 = arith.constant 0 : i32
    return %c0_i32, %c0_i32_0 : i32, i32
  }
  func.func @transform_2(%arg0: i32) -> (i32, i32) {
    %c0_i32 = arith.constant 0 : i32
    %c0_i32_0 = arith.constant 0 : i32
    %c0_i32_1 = arith.constant 0 : i32
    return %c0_i32, %c0_i32_0 : i32, i32
  }
  func.func @transform_3(%arg0: i32) -> (i32, i32) {
    %c0_i32 = arith.constant 0 : i32
    %c0_i32_0 = arith.constant 0 : i32
    return %arg0, %c0_i32 : i32, i32
  }
}

</mosaic_0001>

<llo_original>
// kernel: tpu_custom_call.1
$region0: #{tpu_custom_call.1}
  #allocation0 [shape = 'u32[]', space=smem, size = 0x4, offset = 0x4, fixed_abs, tag = 'smem constant byte address 0x4 - core index']
  #allocation1 [shape = 'u32[72,128]{1,0:T(1,128)}', space=vmem, size = 0x9000, scoped, tag = 'internal scratch']
  %s0 = inlined_call_operand.hbm [shape: f32[32,128], index: 0, kind: input, shape index: {}]
  %s1 = inlined_call_operand.hbm [shape: f32[1,128], index: 1, kind: input, shape index: {}]
  %s2 = inlined_call_operand.vmem [shape: f32[1,128], index: 2, kind: input, shape index: {}]
  %s3 = inlined_call_operand.hbm [shape: bf16[32,128], index: 3, kind: output, shape index: {}]
  %s4 = sld [smem:[#allocation0]]
  $region30: #{tpu_custom_call.1} parent=0
    _
  %s6 = ssub.s32 1, %s4
  %s7 = scalar_select 0, %s6, %s4
  $region1: #{tpu_custom_call.1} parent=0
    #allocation2 [shape = 'u8[16384]{0}', space=vmem, size = 0x4000, scoped, tag = 'input window, operand 0, single buffered']
    #allocation3 [shape = 's32[1]{0}', space=sflag, size = 0x4, scoped, tag = 'scoped memory for tpu_custom_call.1']
    #allocation4 [shape = 's32[1]{0}', space=sflag, size = 0x4, scoped, tag = 'scoped memory for tpu_custom_call.1']
    #allocation5 [shape = 'u8[512]{0}', space=vmem, size = 0x400, scoped, tag = 'input window, operand 1, single buffered']
    #allocation6 [shape = 's32[1]{0}', space=sflag, size = 0x4, scoped, tag = 'scoped memory for tpu_custom_call.1']
    #allocation7 [shape = 'u8[8192]{0}', space=vmem, size = 0x2000, scoped, tag = 'output window, operand 0, single buffered']
    %8 = vsyncpa [#allocation3], 0
    %9 = vsyncpa [#allocation6], 0
    %10 = vsyncpa [#allocation4], 0
    // Predicated region
    $region2: #{tpu_custom_call.1} parent=1 // pred_check
      _
    $region3: #{tpu_custom_call.1} parent=1 // pred_check_branch
      %12 = sbr.rel (0) target = $region5
    $region4: #{tpu_custom_call.1} parent=1 // pred_region
      %14 = vsyncadd [#allocation3], 0
      %s15 = sshll.u32 %s0, 4
      %s16 = int_to_ptr.hbm [resolvable:$true] %s15
      %s17 = sshll.u32 [#allocation2], 4
      %s18 = int_to_ptr.vmem [resolvable:$true] %s17
      %23 = dma.hbm_to_vmem [thread:$0]  %s16, 512, %s18, [#allocation3], 128, 128, 8
    $region5: #{tpu_custom_call.1} parent=1 // pred_fallthru
      _
    // Predicated region
    $region6: #{tpu_custom_call.1} parent=1 // pred_check
      _
    $region7: #{tpu_custom_call.1} parent=1 // pred_check_branch
      %25 = sbr.rel (0) target = $region9
    $region8: #{tpu_custom_call.1} parent=1 // pred_region
      %27 = vsyncadd [#allocation6], 0
      %s29 = sshll.u32 %s1, 4
      %s30 = int_to_ptr.hbm [resolvable:$true] %s29
      %s31 = sshll.u32 [#allocation5], 4
      %s32 = int_to_ptr.vmem [resolvable:$true] %s31
      %34 = dma.hbm_to_vmem [thread:$0]  %s30, 16, %s32, [#allocation6]
    $region9: #{tpu_custom_call.1} parent=1 // pred_fallthru
      _
    // Predicated region
    $region10: #{tpu_custom_call.1} parent=1 // pred_check
      _
    $region11: #{tpu_custom_call.1} parent=1 // pred_check_branch
      %36 = sbr.rel (0) target = $region13
    $region12: #{tpu_custom_call.1} parent=1 // pred_region
      _
    $region13: #{tpu_custom_call.1} parent=1 // pred_fallthru
      _
    // Predicated region
    $region14: #{tpu_custom_call.1} parent=1 // pred_check
      _
    $region15: #{tpu_custom_call.1} parent=1 // pred_check_branch
      %38 = sbr.rel (0) target = $region17
    $region16: #{tpu_custom_call.1} parent=1 // pred_region
      %40 = dma.done [#allocation3], 512
    $region17: #{tpu_custom_call.1} parent=1 // pred_fallthru
      _
    // Predicated region
    $region18: #{tpu_custom_call.1} parent=1 // pred_check
      _
    $region19: #{tpu_custom_call.1} parent=1 // pred_check_branch
      %42 = sbr.rel (0) target = $region21
    $region20: #{tpu_custom_call.1} parent=1 // pred_region
      %44 = dma.done [#allocation6], 16
    $region21: #{tpu_custom_call.1} parent=1 // pred_fallthru
      _
    %v45 = vld [vmem:[#allocation2] sm:$0xff]
    %v46 = vld [vmem:[#allocation2 + $0x8] sm:$0xff]
    %v47 = vld [vmem:[#allocation2 + $0x10] sm:$0xff]
    %v48 = vld [vmem:[#allocation2 + $0x18] sm:$0xff]
    %v49 = vld [vmem:[#allocation5] sm:$0x1]
    %v50 = vld [vmem:[%s2] sm:$0x1]
    %51 = vadd.xlane.f32.xlu0 %v45
    %v52 = vpop.xlane.xlu0 %51
    %53 = vadd.xlane.f32.xlu0 %v46
    %v54 = vpop.xlane.xlu0 %53
    %55 = vadd.xlane.f32.xlu0 %v47
    %v56 = vpop.xlane.xlu0 %55
    %57 = vadd.xlane.f32.xlu0 %v48
    %v58 = vpop.xlane.xlu0 %57
    %v59 = vmul.f32 %v52, 0.0078125
    %v60 = vmul.f32 %v54, 0.0078125
    %v61 = vmul.f32 %v56, 0.0078125
    %v62 = vmul.f32 %v58, 0.0078125
    %v63 = vmul.f32 %v45, %v45
    %v64 = vmul.f32 %v46, %v46
    %v65 = vmul.f32 %v47, %v47
    %v66 = vmul.f32 %v48, %v48
    %67 = vadd.xlane.f32.xlu0 %v63
    %v68 = vpop.xlane.xlu0 %67
    %69 = vadd.xlane.f32.xlu0 %v64
    %v70 = vpop.xlane.xlu0 %69
    %71 = vadd.xlane.f32.xlu0 %v65
    %v72 = vpop.xlane.xlu0 %71
    %73 = vadd.xlane.f32.xlu0 %v66
    %v74 = vpop.xlane.xlu0 %73
    %v75 = vmul.f32 %v68, 0.0078125
    %v76 = vmul.f32 %v70, 0.0078125
    %v77 = vmul.f32 %v72, 0.0078125
    %v78 = vmul.f32 %v74, 0.0078125
    %v79 = vmul.f32 %v59, %v59
    %v80 = vmul.f32 %v60, %v60
    %v81 = vmul.f32 %v61, %v61
    %v82 = vmul.f32 %v62, %v62
    %v83 = vsub.f32 %v75, %v79
    %v84 = vsub.f32 %v76, %v80
    %v85 = vsub.f32 %v77, %v81
    %v86 = vsub.f32 %v78, %v82
    %v87 = vsub.f32 %v45, %v59
    %v88 = vsub.f32 %v46, %v60
    %v89 = vsub.f32 %v47, %v61
    %v90 = vsub.f32 %v48, %v62
    %v91 = vadd.f32 %v83, 1e-12
    %v92 = vadd.f32 %v84, 1e-12
    %v93 = vadd.f32 %v85, 1e-12
    %v94 = vadd.f32 %v86, 1e-12
    %v95 = vrsqrt.pop %v91
    %v96 = vmul.f32 %v95, %v91
    %v97 = vmul.f32 %v96, %v95
    %v98 = vmul.f32 0.5, %v97
    %v99 = vsub.f32 1.5, %v98
    %v100 = vmul.f32 %v95, %v99
    %vm101 = vweird.f32 %v91
    %vm102 = vweird.f32 %v95
    %vm103 = vmor %vm101, %vm102
    %v104 = vsel %vm103, %v95, %v100
    %v105 = vrsqrt.pop %v92
    %v106 = vmul.f32 %v105, %v92
    %v107 = vmul.f32 %v106, %v105
    %v108 = vmul.f32 0.5, %v107
    %v109 = vsub.f32 1.5, %v108
    %v110 = vmul.f32 %v105, %v109
    %vm111 = vweird.f32 %v92
    %vm112 = vweird.f32 %v105
    %vm113 = vmor %vm111, %vm112
    %v114 = vsel %vm113, %v105, %v110
    %v115 = vrsqrt.pop %v93
    %v116 = vmul.f32 %v115, %v93
    %v117 = vmul.f32 %v116, %v115
    %v118 = vmul.f32 0.5, %v117
    %v119 = vsub.f32 1.5, %v118
    %v120 = vmul.f32 %v115, %v119
    %vm121 = vweird.f32 %v93
    %vm122 = vweird.f32 %v115
    %vm123 = vmor %vm121, %vm122
    %v124 = vsel %vm123, %v115, %v120
    %v125 = vrsqrt.pop %v94
    %v126 = vmul.f32 %v125, %v94
    %v127 = vmul.f32 %v126, %v125
    %v128 = vmul.f32 0.5, %v127
    %v129 = vsub.f32 1.5, %v128
    %v130 = vmul.f32 %v125, %v129
    %vm131 = vweird.f32 %v94
    %vm132 = vweird.f32 %v125
    %vm133 = vmor %vm131, %vm132
    %v134 = vsel %vm133, %v125, %v130
    %v135 = vmul.f32 %v87, %v104
    %v136 = vmul.f32 %v88, %v114
    %v137 = vmul.f32 %v89, %v124
    %v138 = vmul.f32 %v90, %v134
    %v140 = vperm.slane %v49, 0
    %v142 = vmul.f32 %v135, %v140
    %v143 = vmul.f32 %v136, %v140
    %v144 = vmul.f32 %v137, %v140
    %v145 = vmul.f32 %v138, %v140
    %v147 = vperm.slane %v50, 0
    %v149 = vadd.f32 %v142, %v147
    %v150 = vadd.f32 %v143, %v147
    %v151 = vadd.f32 %v144, %v147
    %v152 = vadd.f32 %v145, %v147
    %v153 = vpack.c.bf16 %v149, %v149
    %v154 = vpack.c.bf16 %v150, %v150
    %v155 = vpack.c.bf16 %v151, %v151
    %v156 = vpack.c.bf16 %v152, %v152
    %157 = vst [vmem:[#allocation7] sm:$0xf] %v153
    %158 = vst [vmem:[#allocation7 + $0x4] sm:$0xf] %v154
    %159 = vst [vmem:[#allocation7 + $0x8] sm:$0xf] %v155
    %160 = vst [vmem:[#allocation7 + $0xc] sm:$0xf] %v156
    // Predicated region
    $region22: #{tpu_custom_call.1} parent=1 // pred_check
      _
    $region23: #{tpu_custom_call.1} parent=1 // pred_check_branch
      %162 = sbr.rel (0) target = $region25
    $region24: #{tpu_custom_call.1} parent=1 // pred_region
      %164 = vsyncadd [#allocation4], 0
      %s165 = sshll.u32 [#allocation7], 4
      %s166 = int_to_ptr.vmem [resolvable:$true] %s165
      %s167 = sshll.u32 %s3, 4
      %s168 = int_to_ptr.hbm [resolvable:$true] %s167
      %173 = dma.vmem_to_hbm [thread:$0]  %s166, 256, %s168, [#allocation4], 64, 64, 4
    $region25: #{tpu_custom_call.1} parent=1 // pred_fallthru
      _
    // Predicated region
    $region26: #{tpu_custom_call.1} parent=1 // pred_check
      _
    $region27: #{tpu_custom_call.1} parent=1 // pred_check_branch
      %175 = sbr.rel (0) target = $region29
    $region28: #{tpu_custom_call.1} parent=1 // pred_region
      %177 = dma.done [#allocation4], 256
    $region29: #{tpu_custom_call.1} parent=1 // pred_fallthru
      _
    %178 = vsyncpa [#allocation3], 1
    %179 = vsyncpa [#allocation6], 1
    %180 = vsyncpa [#allocation4], 1

</llo_original>
